<compile_context>
chip_gen: v6e
topology: v6e:2x2x1
jax: 0.10.0
libtpu: 0.0.40
codegen_flags: <defaults>
</compile_context>

<pallas_src>
import jax
import jax.numpy as jnp
from jax.experimental import pallas as pl
from jax.experimental.pallas import tpu as pltpu


def _round_up(n, m):
    return (n + m - 1) // m * m


def net_2n_kernel(x_ref, w1_ref, b1_ref, w2_ref, b2_ref, w3r_ref, b3_ref, o_ref):
    x = x_ref[...]                                   # (TILE_B, D), f32 or bf16

    # Layer 1: (TILE_B, D) @ (D, H) on the MXU, f32 accumulation.
    h1 = jnp.dot(x, w1_ref[...], preferred_element_type=jnp.float32) + b1_ref[...]
    h1 = jnp.maximum(h1, 0.0)                        # ReLU (VPU)

    # Layer 2: (TILE_B, H) @ (H, H).
    h2 = jnp.dot(h1, w2_ref[...], preferred_element_type=jnp.float32) + b2_ref[...]
    h2 = jnp.maximum(h2, 0.0)                        # ReLU (VPU)

    # Layer 3 (H -> 1): VPU multiply + lane reduction instead of a 1-wide MXU matmul.
    y = jnp.sum(h2 * w3r_ref[...], axis=-1, keepdims=True) + b3_ref[...]

    o_ref[...] = jax.lax.erf(y)                      # torch.erf


def net_2n_forward(x, params, *, block_b=1024, use_bf16_inputs=False):
    """x: (B, ...) -> flattened to (B, D).  params: w1,b1,w2,b2,w3_row,b3."""
    B = x.shape[0]
    x = x.reshape(B, -1).astype(jnp.float32)         # nn.Flatten
    D = x.shape[1]

    w1, b1 = params["w1"], params["b1"]
    w2, b2 = params["w2"], params["b2"]
    w3_row, b3 = params["w3_row"], params["b3"]
    H = w1.shape[1]
    O = b3.shape[1]

    if use_bf16_inputs:
        # Halves HBM bytes of the dominant x stream; MXU still accumulates in f32.
        x = x.astype(jnp.bfloat16)
        w1 = w1.astype(jnp.bfloat16)

    # Batch tile: large to amortize per-step overhead, but never larger than needed.
    tile_b = min(block_b, _round_up(B, 8))
    b_pad = _round_up(B, tile_b)
    if b_pad != B:
        x = jnp.pad(x, ((0, b_pad - B), (0, 0)))     # padded rows computed & discarded

    grid = (pl.cdiv(b_pad, tile_b),)

    # Weights/biases: same block every step -> fetched once, VMEM-resident.
    resident = lambda shape: pl.BlockSpec(shape, lambda i: (0, 0))

    out = pl.pallas_call(
        net_2n_kernel,
        out_shape=jax.ShapeDtypeStruct((b_pad, O), jnp.float32),
        grid=grid,
        in_specs=[
            pl.BlockSpec((tile_b, D), lambda i: (i, 0)),  # x: streamed per batch tile
            resident((D, H)),                             # w1
            resident((1, H)),                             # b1
            resident((H, H)),                             # w2
            resident((1, H)),                             # b2
            resident((1, H)),                             # w3 (row form)
            resident((1, O)),                             # b3
        ],
        out_specs=pl.BlockSpec((tile_b, O), lambda i: (i, 0)),
        compiler_params=pltpu.CompilerParams(
            dimension_semantics=("parallel",)),           # shard batch tiles on v7x's 2 TCs
    )(x, w1, b1, w2, b2, w3_row, b3)

    return out[:B]


def init_params(key, in_features, hidden=2, out_features=1):
    """Mimic torch.nn.Linear default init (uniform +-1/sqrt(fan_in))."""
    ks = jax.random.split(key, 6)

    def linear(kw, kb, fan_in, fan_out):
        bound = 1.0 / jnp.sqrt(jnp.float32(fan_in))
        w = jax.random.uniform(kw, (fan_in, fan_out), jnp.float32, -bound, bound)
        b = jax.random.uniform(kb, (1, fan_out), jnp.float32, -bound, bound)
        return w, b

    w1, b1 = linear(ks[0], ks[1], in_features, hidden)
    w2, b2 = linear(ks[2], ks[3], hidden, hidden)
    w3, b3 = linear(ks[4], ks[5], hidden, out_features)
    return {"w1": w1, "b1": b1, "w2": w2, "b2": b2,
            "w3_row": w3.T, "b3": b3}                 # final weight kept as (1, hidden)


def reference_forward(x, p):
    x = x.reshape(x.shape[0], -1).astype(jnp.float32)
    h1 = jnp.maximum(x @ p["w1"] + p["b1"], 0.0)
    h2 = jnp.maximum(h1 @ p["w2"] + p["b2"], 0.0)
    y = jnp.sum(h2 * p["w3_row"], axis=-1, keepdims=True) + p["b3"]
    return jax.lax.erf(y)


if __name__ == "__main__":
    key = jax.random.PRNGKey(0)
    k_x, k_x2, k_p = jax.random.split(key, 3)

    # Small example consistent with the module: Flatten collapses (4, 4) -> D = 16.
    x = jax.random.normal(k_x, (8, 4, 4), jnp.float32)
    params = init_params(k_p, 16, hidden=2, out_features=1)

    out = jax.block_until_ready(net_2n_forward(x, params))
    ref = reference_forward(x, params)
    assert out.shape == (8, 1)
    assert jnp.allclose(out, ref, atol=1e-5, rtol=1e-5), "mismatch vs JAX reference (small)"

    # Multi-tile case with padding: B=300 not a multiple of the 128-row tile.
    x2 = jax.random.normal(k_x2, (300, 16), jnp.float32)
    out2 = jax.block_until_ready(net_2n_forward(x2, params, block_b=128))
    ref2 = reference_forward(x2, params)
    assert out2.shape == (300, 1)
    assert jnp.allclose(out2, ref2, atol=1e-5, rtol=1e-5), "mismatch vs JAX reference (tiled)"

    print("KERNEL_OK")
</pallas_src>

<mosaic_0001>
module attributes {stable_mosaic.version = 11 : i64} {
  func.func @net_2n_kernel(%arg0: i32, %arg1: memref<8x16xf32, #tpu.memory_space<vmem>>, %arg2: memref<16x2xf32, #tpu.memory_space<vmem>>, %arg3: memref<1x2xf32, #tpu.memory_space<vmem>>, %arg4: memref<2x2xf32, #tpu.memory_space<vmem>>, %arg5: memref<1x2xf32, #tpu.memory_space<vmem>>, %arg6: memref<1x2xf32, #tpu.memory_space<vmem>>, %arg7: memref<1x1xf32, #tpu.memory_space<vmem>>, %arg8: memref<8x1xf32, #tpu.memory_space<vmem>>) attributes {dimension_semantics = [#tpu.dimension_semantics<parallel>], iteration_bounds = array<i64: 1>, scalar_prefetch = 0 : i64, scratch_operands = 0 : i64, tpu.core_type = #tpu.core_type<tc>, window_params = [{transform_indices = @transform_0, window_bounds = array<i64: 8, 16>}, {pipeline_mode = #tpu.pipeline_mode<synchronous>, transform_indices = @transform_1, window_bounds = array<i64: 16, 2>}, {pipeline_mode = #tpu.pipeline_mode<synchronous>, transform_indices = @transform_2, window_bounds = array<i64: 1, 2>}, {pipeline_mode = #tpu.pipeline_mode<synchronous>, transform_indices = @transform_3, window_bounds = array<i64: 2, 2>}, {pipeline_mode = #tpu.pipeline_mode<synchronous>, transform_indices = @transform_4, window_bounds = array<i64: 1, 2>}, {pipeline_mode = #tpu.pipeline_mode<synchronous>, transform_indices = @transform_5, window_bounds = array<i64: 1, 2>}, {pipeline_mode = #tpu.pipeline_mode<synchronous>, transform_indices = @transform_6, window_bounds = array<i64: 1, 1>}, {transform_indices = @transform_7, window_bounds = array<i64: 8, 1>}]} {
    %c0 = arith.constant 0 : index
    %c0_0 = arith.constant 0 : index
    %0 = vector.load %arg1[%c0, %c0_0] : memref<8x16xf32, #tpu.memory_space<vmem>>, vector<8x16xf32>
    %c0_1 = arith.constant 0 : index
    %c0_2 = arith.constant 0 : index
    %1 = vector.load %arg2[%c0_1, %c0_2] : memref<16x2xf32, #tpu.memory_space<vmem>>, vector<16x2xf32>
    %cst = arith.constant dense<0.000000e+00> : vector<8x2xf32>
    %2 = tpu.matmul %0, %1, %cst {dimension_numbers = #tpu.dot_dimension_numbers<[1], [0], [0], [1], [0, 0, 1, 1], [], []>} : vector<8x16xf32>, vector<16x2xf32>, vector<8x2xf32> -> vector<8x2xf32>
    %c0_3 = arith.constant 0 : index
    %c0_4 = arith.constant 0 : index
    %3 = vector.load %arg3[%c0_3, %c0_4] : memref<1x2xf32, #tpu.memory_space<vmem>>, vector<1x2xf32>
    %4 = vector.broadcast %3 : vector<1x2xf32> to vector<8x2xf32>
    %5 = arith.addf %2, %4 : vector<8x2xf32>
    %cst_5 = arith.constant 0.000000e+00 : f32
    %6 = vector.broadcast %cst_5 : f32 to vector<8x2xf32>
    %7 = arith.maximumf %5, %6 : vector<8x2xf32>
    %c0_6 = arith.constant 0 : index
    %c0_7 = arith.constant 0 : index
    %8 = vector.load %arg4[%c0_6, %c0_7] : memref<2x2xf32, #tpu.memory_space<vmem>>, vector<2x2xf32>
    %cst_8 = arith.constant dense<0.000000e+00> : vector<8x2xf32>
    %9 = tpu.matmul %7, %8, %cst_8 {dimension_numbers = #tpu.dot_dimension_numbers<[1], [0], [0], [1], [0, 0, 1, 1], [], []>} : vector<8x2xf32>, vector<2x2xf32>, vector<8x2xf32> -> vector<8x2xf32>
    %c0_9 = arith.constant 0 : index
    %c0_10 = arith.constant 0 : index
    %10 = vector.load %arg5[%c0_9, %c0_10] : memref<1x2xf32, #tpu.memory_space<vmem>>, vector<1x2xf32>
    %11 = vector.broadcast %10 : vector<1x2xf32> to vector<8x2xf32>
    %12 = arith.addf %9, %11 : vector<8x2xf32>
    %cst_11 = arith.constant 0.000000e+00 : f32
    %13 = vector.broadcast %cst_11 : f32 to vector<8x2xf32>
    %14 = arith.maximumf %12, %13 : vector<8x2xf32>
    %c0_12 = arith.constant 0 : index
    %c0_13 = arith.constant 0 : index
    %15 = vector.load %arg6[%c0_12, %c0_13] : memref<1x2xf32, #tpu.memory_space<vmem>>, vector<1x2xf32>
    %16 = vector.broadcast %15 : vector<1x2xf32> to vector<8x2xf32>
    %17 = arith.mulf %14, %16 : vector<8x2xf32>
    %cst_14 = arith.constant dense<0.000000e+00> : vector<8xf32>
    %18 = vector.multi_reduction <add>, %17, %cst_14 [1] : vector<8x2xf32> to vector<8xf32>
    %19 = vector.shape_cast %18 : vector<8xf32> to vector<8x1xf32>
    %c0_15 = arith.constant 0 : index
    %c0_16 = arith.constant 0 : index
    %20 = vector.load %arg7[%c0_15, %c0_16] : memref<1x1xf32, #tpu.memory_space<vmem>>, vector<1x1xf32>
    %21 = vector.broadcast %20 : vector<1x1xf32> to vector<8x1xf32>
    %22 = arith.addf %19, %21 : vector<8x1xf32>
    %23 = math.erf %22 : vector<8x1xf32>
    %c0_17 = arith.constant 0 : index
    %c0_18 = arith.constant 0 : index
    %24 = vector.load %arg8[%c0_17, %c0_18] : memref<8x1xf32, #tpu.memory_space<vmem>>, vector<8x1xf32>
    tpu.vector_store %arg8[%c0_17, %c0_18], %23 {strides = array<i32>} : memref<8x1xf32, #tpu.memory_space<vmem>>, vector<8x1xf32>,
    return
  }
  func.func @transform_0(%arg0: i32) -> (i32, i32) {
    %c0_i32 = arith.constant 0 : i32
    %c0_i32_0 = arith.constant 0 : i32
    return %arg0, %c0_i32 : i32, i32
  }
  func.func @transform_1(%arg0: i32) -> (i32, i32) {
    %c0_i32 = arith.constant 0 : i32
    %c0_i32_0 = arith.constant 0 : i32
    %c0_i32_1 = arith.constant 0 : i32
    return %c0_i32, %c0_i32_0 : i32, i32
  }
  func.func @transform_2(%arg0: i32) -> (i32, i32) {
    %c0_i32 = arith.constant 0 : i32
    %c0_i32_0 = arith.constant 0 : i32
    %c0_i32_1 = arith.constant 0 : i32
    return %c0_i32, %c0_i32_0 : i32, i32
  }
  func.func @transform_3(%arg0: i32) -> (i32, i32) {
    %c0_i32 = arith.constant 0 : i32
    %c0_i32_0 = arith.constant 0 : i32
    %c0_i32_1 = arith.constant 0 : i32
    return %c0_i32, %c0_i32_0 : i32, i32
  }
  func.func @transform_4(%arg0: i32) -> (i32, i32) {
    %c0_i32 = arith.constant 0 : i32
    %c0_i32_0 = arith.constant 0 : i32
    %c0_i32_1 = arith.constant 0 : i32
    return %c0_i32, %c0_i32_0 : i32, i32
  }
  func.func @transform_5(%arg0: i32) -> (i32, i32) {
    %c0_i32 = arith.constant 0 : i32
    %c0_i32_0 = arith.constant 0 : i32
    %c0_i32_1 = arith.constant 0 : i32
    return %c0_i32, %c0_i32_0 : i32, i32
  }
  func.func @transform_6(%arg0: i32) -> (i32, i32) {
    %c0_i32 = arith.constant 0 : i32
    %c0_i32_0 = arith.constant 0 : i32
    %c0_i32_1 = arith.constant 0 : i32
    return %c0_i32, %c0_i32_0 : i32, i32
  }
  func.func @transform_7(%arg0: i32) -> (i32, i32) {
    %c0_i32 = arith.constant 0 : i32
    %c0_i32_0 = arith.constant 0 : i32
    return %arg0, %c0_i32 : i32, i32
  }
}

</mosaic_0001>

<llo_original>
// kernel: tpu_custom_call.1
$region0: #{tpu_custom_call.1}
  #allocation0 [shape = 'u32[]', space=smem, size = 0x4, offset = 0x4, fixed_abs, tag = 'smem constant byte address 0x4 - core index']
  #allocation1 [shape = 'u32[144,128]{1,0:T(1,128)}', space=vmem, size = 0x12000, scoped, tag = 'internal scratch']
  #allocation2 [shape = 'f32[1,1]{1,0:T(1,128)S(1)}', space=vmem, size = 0x200, scoped, tag = 'scoped memory for tpu_custom_call.1']
  %s0 = inlined_call_operand.vmem [shape: f32[8,16], index: 0, kind: input, shape index: {}]
  %s1 = inlined_call_operand.vmem [shape: f32[16,2], index: 1, kind: input, shape index: {}]
  %s2 = inlined_call_operand.vmem [shape: f32[1,2], index: 2, kind: input, shape index: {}]
  %s3 = inlined_call_operand.vmem [shape: f32[2,2], index: 3, kind: input, shape index: {}]
  %s4 = inlined_call_operand.vmem [shape: f32[1,2], index: 4, kind: input, shape index: {}]
  %s5 = inlined_call_operand.vmem [shape: f32[1,2], index: 5, kind: input, shape index: {}]
  %s6 = inlined_call_operand.<no memory space> [shape: f32[1,1], index: 6, kind: input, shape index: {}]
  %s7 = inlined_call_operand.vmem [shape: f32[8,1], index: 7, kind: output, shape index: {}]
  %s8 = sld [smem:[#allocation0]]
  $region38: #{tpu_custom_call.1} parent=0
    _
  %s10 = ssub.s32 1, %s8
  %s11 = scalar_select 0, %s10, %s8
  %v12 = vstv %s6
  %13 = vst [vmem:[#allocation2] sm:$0x1] %v12
  // Predicated region
  $region2: #{tpu_custom_call.1} parent=0 // pred_check
    _
  $region3: #{tpu_custom_call.1} parent=0 // pred_check_branch
    %15 = sbr.rel (0) target = $region5
  $region4: #{tpu_custom_call.1} parent=0 // pred_region
    _
  $region5: #{tpu_custom_call.1} parent=0 // pred_fallthru
    _
  // Predicated region
  $region6: #{tpu_custom_call.1} parent=0 // pred_check
    _
  $region7: #{tpu_custom_call.1} parent=0 // pred_check_branch
    %17 = sbr.rel (0) target = $region9
  $region8: #{tpu_custom_call.1} parent=0 // pred_region
    _
  $region9: #{tpu_custom_call.1} parent=0 // pred_fallthru
    _
  // Predicated region
  $region10: #{tpu_custom_call.1} parent=0 // pred_check
    _
  $region11: #{tpu_custom_call.1} parent=0 // pred_check_branch
    %19 = sbr.rel (0) target = $region13
  $region12: #{tpu_custom_call.1} parent=0 // pred_region
    _
  $region13: #{tpu_custom_call.1} parent=0 // pred_fallthru
    _
  // Predicated region
  $region14: #{tpu_custom_call.1} parent=0 // pred_check
    _
  $region15: #{tpu_custom_call.1} parent=0 // pred_check_branch
    %21 = sbr.rel (0) target = $region17
  $region16: #{tpu_custom_call.1} parent=0 // pred_region
    _
  $region17: #{tpu_custom_call.1} parent=0 // pred_fallthru
    _
  // Predicated region
  $region18: #{tpu_custom_call.1} parent=0 // pred_check
    _
  $region19: #{tpu_custom_call.1} parent=0 // pred_check_branch
    %23 = sbr.rel (0) target = $region21
  $region20: #{tpu_custom_call.1} parent=0 // pred_region
    _
  $region21: #{tpu_custom_call.1} parent=0 // pred_fallthru
    _
  // Predicated region
  $region22: #{tpu_custom_call.1} parent=0 // pred_check
    _
  $region23: #{tpu_custom_call.1} parent=0 // pred_check_branch
    %25 = sbr.rel (0) target = $region25
  $region24: #{tpu_custom_call.1} parent=0 // pred_region
    _
  $region25: #{tpu_custom_call.1} parent=0 // pred_fallthru
    _
  // Predicated region
  $region26: #{tpu_custom_call.1} parent=0 // pred_check
    _
  $region27: #{tpu_custom_call.1} parent=0 // pred_check_branch
    %27 = sbr.rel (0) target = $region29
  $region28: #{tpu_custom_call.1} parent=0 // pred_region
    _
  $region29: #{tpu_custom_call.1} parent=0 // pred_fallthru
    _
  %v28 = vld [vmem:[%s0] sm:$0xff]
  %v29 = vld [vmem:[%s1] sm:$0xff]
  %v30 = vld [vmem:[%s1 + $0x8] sm:$0xff]
  %v31 = vld [vmem:[%s2] sm:$0x1]
  %v33 = vlaneseq
  %v34 = vshrl.u32 %v33, 7
  %v35 = vsub.s32 0, %v34
  %v36 = vrot.slane %v31, %v35
  %vm38 = vcmask 130048
  %v40 = vsel %vm38, %v28, 0
  %42 = vmatprep.subr.mxu0 0.0
  %43 = vmatpush1.msra.mxu0 0.0
  %44 = vmatprep.subr.mxu0 0.0
  %45 = vmatpush1.msra.mxu0 0.0
  %46 = vmatprep.subr.mxu0 0.0
  %47 = vmatpush1.msra.mxu0 0.0
  %48 = vmatprep.subr.mxu0 0.0
  %49 = vmatpush1.msra.mxu0 0.0
  %50 = vmatprep.subr.mxu0 0.0
  %51 = vmatpush1.msra.mxu0 0.0
  %52 = vmatprep.subr.mxu0 0.0
  %53 = vmatpush1.msra.mxu0 0.0
  %54 = vmatprep.subr.mxu0 0.0
  %55 = vmatpush1.msra.mxu0 0.0
  %56 = vmatprep.subr.mxu0 0.0
  %57 = vmatpush1.msra.mxu0 0.0
  %58 = vmatprep.subr.mxu0 0.0
  %59 = vmatpush1.msra.mxu0 0.0
  %60 = vmatprep.subr.mxu0 0.0
  %61 = vmatpush1.msra.mxu0 0.0
  %62 = vmatprep.subr.mxu0 0.0
  %63 = vmatpush1.msra.mxu0 0.0
  %64 = vmatprep.subr.mxu0 0.0
  %65 = vmatpush1.msra.mxu0 0.0
  %66 = vmatprep.subr.mxu0 0.0
  %67 = vmatpush1.msra.mxu0 0.0
  %68 = vmatprep.subr.mxu0 0.0
  %69 = vmatpush1.msra.mxu0 0.0
  %70 = vmatprep.subr.mxu0 0.0
  %71 = vmatpush1.msra.mxu0 %v30
  %72 = vmatprep.subr.mxu0 0.0
  %73 = vmatpush1.msra.mxu0 %v29
  %74 = vmatprep.subr.mxu0 0.0
  %75 = vmatpush2.msra.mxu0 0.0
  %76 = vmatprep.subr.mxu0 0.0
  %77 = vmatpush2.msra.mxu0 0.0
  %78 = vmatprep.subr.mxu0 0.0
  %79 = vmatpush2.msra.mxu0 0.0
  %80 = vmatprep.subr.mxu0 0.0
  %81 = vmatpush2.msra.mxu0 0.0
  %82 = vmatprep.subr.mxu0 0.0
  %83 = vmatpush2.msra.mxu0 0.0
  %84 = vmatprep.subr.mxu0 0.0
  %85 = vmatpush2.msra.mxu0 0.0
  %86 = vmatprep.subr.mxu0 0.0
  %87 = vmatpush2.msra.mxu0 0.0
  %88 = vmatprep.subr.mxu0 0.0
  %89 = vmatpush2.msra.mxu0 0.0
  %90 = vmatprep.subr.mxu0 0.0
  %91 = vmatpush2.msra.mxu0 0.0
  %92 = vmatprep.subr.mxu0 0.0
  %93 = vmatpush2.msra.mxu0 0.0
  %94 = vmatprep.subr.mxu0 0.0
  %95 = vmatpush2.msra.mxu0 0.0
  %96 = vmatprep.subr.mxu0 0.0
  %97 = vmatpush2.msra.mxu0 0.0
  %98 = vmatprep.subr.mxu0 0.0
  %99 = vmatpush2.msra.mxu0 0.0
  %100 = vmatprep.subr.mxu0 0.0
  %101 = vmatpush2.msra.mxu0 0.0
  %102 = vmatprep.subr.mxu0 0.0
  %103 = vmatpush2.msra.mxu0 0.0
  %104 = vmatprep.subr.mxu0 0.0
  %105 = vmatpush2.msra.mxu0 0.0
  %106 = vmatprep.mubr.f32.mxu0 0.0
  %107 = vmatmul.mubr.f32.gmra.mxu0 %v40
  %v108 = vpop.f32.mrf.mxu0
  %v109 = vadd.f32 %v36, %v108
  %v110 = vpop.f32.mrf.mxu0
  %111 = vdwg.mxu0
  %v112 = vmax.f32 %v109, 0.0
  %v113 = vld [vmem:[%s3] sm:$0x3]
  %v114 = vld [vmem:[%s4] sm:$0x1]
  %v116 = vlaneseq
  %v117 = vshrl.u32 %v116, 7
  %v118 = vsub.s32 0, %v117
  %v119 = vrot.slane %v114, %v118
  %vm121 = vcmask 15360
  %v123 = vsel %vm121, %v112, 0
  %vm125 = vcmask 1041408
  %v127 = vsel %vm125, %v113, 0
  %129 = vmatprep.subr.mxu0 0.0
  %130 = vmatpush1.msra.mxu0 0.0
  %131 = vmatprep.subr.mxu0 0.0
  %132 = vmatpush1.msra.mxu0 0.0
  %133 = vmatprep.subr.mxu0 0.0
  %134 = vmatpush1.msra.mxu0 0.0
  %135 = vmatprep.subr.mxu0 0.0
  %136 = vmatpush1.msra.mxu0 0.0
  %137 = vmatprep.subr.mxu0 0.0
  %138 = vmatpush1.msra.mxu0 0.0
  %139 = vmatprep.subr.mxu0 0.0
  %140 = vmatpush1.msra.mxu0 0.0
  %141 = vmatprep.subr.mxu0 0.0
  %142 = vmatpush1.msra.mxu0 0.0
  %143 = vmatprep.subr.mxu0 0.0
  %144 = vmatpush1.msra.mxu0 0.0
  %145 = vmatprep.subr.mxu0 0.0
  %146 = vmatpush1.msra.mxu0 0.0
  %147 = vmatprep.subr.mxu0 0.0
  %148 = vmatpush1.msra.mxu0 0.0
  %149 = vmatprep.subr.mxu0 0.0
  %150 = vmatpush1.msra.mxu0 0.0
  %151 = vmatprep.subr.mxu0 0.0
  %152 = vmatpush1.msra.mxu0 0.0
  %153 = vmatprep.subr.mxu0 0.0
  %154 = vmatpush1.msra.mxu0 0.0
  %155 = vmatprep.subr.mxu0 0.0
  %156 = vmatpush1.msra.mxu0 0.0
  %157 = vmatprep.subr.mxu0 0.0
  %158 = vmatpush1.msra.mxu0 0.0
  %159 = vmatprep.subr.mxu0 0.0
  %160 = vmatpush1.msra.mxu0 %v127
  %161 = vmatprep.subr.mxu0 0.0
  %162 = vmatpush2.msra.mxu0 0.0
  %163 = vmatprep.subr.mxu0 0.0
  %164 = vmatpush2.msra.mxu0 0.0
  %165 = vmatprep.subr.mxu0 0.0
  %166 = vmatpush2.msra.mxu0 0.0
  %167 = vmatprep.subr.mxu0 0.0
  %168 = vmatpush2.msra.mxu0 0.0
  %169 = vmatprep.subr.mxu0 0.0
  %170 = vmatpush2.msra.mxu0 0.0
  %171 = vmatprep.subr.mxu0 0.0
  %172 = vmatpush2.msra.mxu0 0.0
  %173 = vmatprep.subr.mxu0 0.0
  %174 = vmatpush2.msra.mxu0 0.0
  %175 = vmatprep.subr.mxu0 0.0
  %176 = vmatpush2.msra.mxu0 0.0
  %177 = vmatprep.subr.mxu0 0.0
  %178 = vmatpush2.msra.mxu0 0.0
  %179 = vmatprep.subr.mxu0 0.0
  %180 = vmatpush2.msra.mxu0 0.0
  %181 = vmatprep.subr.mxu0 0.0
  %182 = vmatpush2.msra.mxu0 0.0
  %183 = vmatprep.subr.mxu0 0.0
  %184 = vmatpush2.msra.mxu0 0.0
  %185 = vmatprep.subr.mxu0 0.0
  %186 = vmatpush2.msra.mxu0 0.0
  %187 = vmatprep.subr.mxu0 0.0
  %188 = vmatpush2.msra.mxu0 0.0
  %189 = vmatprep.subr.mxu0 0.0
  %190 = vmatpush2.msra.mxu0 0.0
  %191 = vmatprep.subr.mxu0 0.0
  %192 = vmatpush2.msra.mxu0 0.0
  %193 = vmatprep.mubr.f32.mxu0 0.0
  %194 = vmatmul.mubr.f32.gmra.mxu0 %v123
  %v195 = vpop.f32.mrf.mxu0
  %v196 = vadd.f32 %v119, %v195
  %v197 = vpop.f32.mrf.mxu0
  %198 = vdwg.mxu0
  %v199 = vmax.f32 %v196, 0.0
  %v200 = vld [vmem:[%s5] sm:$0x1]
  %v202 = vlaneseq
  %v203 = vshrl.u32 %v202, 7
  %v204 = vsub.s32 0, %v203
  %v205 = vrot.slane %v200, %v204
  %v207 = vmul.f32 %v199, %v205
  %v208 = vsel %vm121, %v207, 0.0
  %209 = vadd.xlane.f32.xlu0 %v208
  %v210 = vpop.xlane.xlu0 %209
  %v211 = vld [vmem:[#allocation2] sm:$0x1]
  %v213 = vlaneseq
  %v214 = vshrl.u32 %v213, 7
  %v215 = vsub.s32 0, %v214
  %v216 = vrot.slane %v211, %v215
  %v218 = vadd.f32 %v210, %v216
  %v219 = verf.f32.pop %v218
  %vm220 = vcmask 7168
  %221 = vst.msk [vmem:[%s7] sm:$0xff] %vm220, %v219
  // Predicated region
  $region30: #{tpu_custom_call.1} parent=0 // pred_check
    _
  $region31: #{tpu_custom_call.1} parent=0 // pred_check_branch
    %223 = sbr.rel (0) target = $region33
  $region32: #{tpu_custom_call.1} parent=0 // pred_region
    _
  $region33: #{tpu_custom_call.1} parent=0 // pred_fallthru
    _
  // Predicated region
  $region34: #{tpu_custom_call.1} parent=0 // pred_check
    _
  $region35: #{tpu_custom_call.1} parent=0 // pred_check_branch
    %225 = sbr.rel (0) target = $region37
  $region36: #{tpu_custom_call.1} parent=0 // pred_region
    _
  $region37: #{tpu_custom_call.1} parent=0 // pred_fallthru
    _

</llo_original>
